<compile_context>
chip_gen: v6e
topology: v6e:2x2x1
jax: 0.10.0
libtpu: 0.0.40
codegen_flags: <defaults>
</compile_context>

<pallas_src>
import math
from functools import partial

import jax
import jax.numpy as jnp
from jax.experimental import pallas as pl
from jax.experimental.pallas import tpu as pltpu


def _round_up(x, m):
    return -(-x // m) * m


# ----------------------------------------------------------------------------
# Fused ClassNet kernel: o = relu(x @ w1 + b1) @ w2 + b2
# ----------------------------------------------------------------------------
def _classnet_kernel(x_ref, w1_ref, b1_ref, w2_ref, b2_ref, o_ref):
    # fc1: bf16 operands on the MXU, f32 accumulation.
    h = jnp.dot(x_ref[...], w1_ref[...], preferred_element_type=jnp.float32)
    h = jnp.maximum(h + b1_ref[...], 0.0)            # bias + ReLU in f32 (VPU)
    # fc2: cast hidden back to bf16 for the second MXU pass.
    out = jnp.dot(h.astype(w2_ref.dtype), w2_ref[...],
                  preferred_element_type=jnp.float32)
    o_ref[...] = (out + b2_ref[...]).astype(o_ref.dtype)


@partial(jax.jit, static_argnames=())
def classnet_forward(x, w1, b1, w2, b2):
    """ClassNet forward.

    x : (M, 512) float32
    w1: (512, 256)  (fc1 weight in in->out layout, i.e. torch weight.T)
    b1: (256,)
    w2: (256, num_classes)
    b2: (num_classes,)
    returns (M, num_classes) float32
    """
    M, K1 = x.shape
    K1_, H = w1.shape
    H_, C = w2.shape
    assert K1 == K1_ and H == H_

    # bf16 sublane tile is (16, 128): pad M to 16; pad output N to 128 for
    # lane-dense stores.
    Mp = _round_up(max(M, 16), 16)
    Np = _round_up(C, 128)
    tm = Mp if Mp <= 512 else 512
    Mp = _round_up(Mp, tm)

    x_p = jnp.pad(x.astype(jnp.bfloat16), ((0, Mp - M), (0, 0)))
    w1_b = w1.astype(jnp.bfloat16)
    w2_p = jnp.pad(w2.astype(jnp.bfloat16), ((0, 0), (0, Np - C)))
    b1_r = b1.astype(jnp.float32).reshape(1, H)
    b2_p = jnp.pad(b2.astype(jnp.float32), (0, Np - C)).reshape(1, Np)

    grid = (Mp // tm,)

    out = pl.pallas_call(
        _classnet_kernel,
        out_shape=jax.ShapeDtypeStruct((Mp, Np), jnp.float32),
        grid_spec=pltpu.PrefetchScalarGridSpec(
            num_scalar_prefetch=0,
            grid=grid,
            in_specs=[
                pl.BlockSpec((tm, K1), lambda i: (i, 0)),   # x tile
                pl.BlockSpec((K1, H), lambda i: (0, 0)),    # w1 (resident)
                pl.BlockSpec((1, H), lambda i: (0, 0)),     # b1
                pl.BlockSpec((H, Np), lambda i: (0, 0)),    # w2 (resident)
                pl.BlockSpec((1, Np), lambda i: (0, 0)),    # b2
            ],
            out_specs=pl.BlockSpec((tm, Np), lambda i: (i, 0)),
        ),
        compiler_params=pltpu.CompilerParams(
            dimension_semantics=("parallel",),
            vmem_limit_bytes=64 * 1024 * 1024,
        ),
    )(x_p, w1_b, b1_r, w2_p, b2_p)

    return out[:M, :C]


# ----------------------------------------------------------------------------
# Deterministic synthetic parameters (nn.Linear-style uniform init)
# ----------------------------------------------------------------------------
def make_classnet_params(key, num_classes):
    k1, k2, k3, k4 = jax.random.split(key, 4)
    s1 = 1.0 / math.sqrt(512.0)
    s2 = 1.0 / math.sqrt(256.0)
    # Stored directly in (in, out) layout == torch weight transposed.
    w1 = jax.random.uniform(k1, (512, 256), jnp.float32, -s1, s1)
    b1 = jax.random.uniform(k2, (256,), jnp.float32, -s1, s1)
    w2 = jax.random.uniform(k3, (256, num_classes), jnp.float32, -s2, s2)
    b2 = jax.random.uniform(k4, (num_classes,), jnp.float32, -s2, s2)
    return w1, b1, w2, b2


# ----------------------------------------------------------------------------
if __name__ == "__main__":
    num_classes = 10
    batch = 2  # small batch; fc1 input dim is fixed at 512 by the module

    key = jax.random.PRNGKey(0)
    k_params, k_input = jax.random.split(key)
    w1, b1, w2, b2 = make_classnet_params(k_params, num_classes)
    x = jax.random.normal(k_input, (batch, 512), jnp.float32)

    out = jax.block_until_ready(classnet_forward(x, w1, b1, w2, b2))

    assert out.shape == (batch, num_classes), out.shape
    assert bool(jnp.all(jnp.isfinite(out)))

    # Pure-JAX reference using the same bf16 operand cast / f32 accumulation.
    h_ref = jnp.maximum(
        jnp.dot(x.astype(jnp.bfloat16), w1.astype(jnp.bfloat16),
                preferred_element_type=jnp.float32) + b1, 0.0)
    ref = jnp.dot(h_ref.astype(jnp.bfloat16), w2.astype(jnp.bfloat16),
                  preferred_element_type=jnp.float32) + b2
    assert bool(jnp.allclose(out, ref, atol=2e-2, rtol=2e-2)), (
        float(jnp.max(jnp.abs(out - ref))))

    print("KERNEL_OK")
</pallas_src>

<mosaic_0001>
module attributes {stable_mosaic.version = 11 : i64} {
  func.func @_classnet_kernel(%arg0: i32, %arg1: memref<16x512xbf16, #tpu.memory_space<vmem>>, %arg2: memref<512x256xbf16, #tpu.memory_space<vmem>>, %arg3: memref<1x256xf32, #tpu.memory_space<vmem>>, %arg4: memref<256x128xbf16, #tpu.memory_space<vmem>>, %arg5: memref<1x128xf32, #tpu.memory_space<vmem>>, %arg6: memref<16x128xf32, #tpu.memory_space<vmem>>) attributes {dimension_semantics = [#tpu.dimension_semantics<parallel>], iteration_bounds = array<i64: 1>, scalar_prefetch = 0 : i64, scratch_operands = 0 : i64, tpu.core_type = #tpu.core_type<tc>, window_params = [{transform_indices = @transform_0, window_bounds = array<i64: 16, 512>}, {pipeline_mode = #tpu.pipeline_mode<synchronous>, transform_indices = @transform_1, window_bounds = array<i64: 512, 256>}, {pipeline_mode = #tpu.pipeline_mode<synchronous>, transform_indices = @transform_2, window_bounds = array<i64: 1, 256>}, {pipeline_mode = #tpu.pipeline_mode<synchronous>, transform_indices = @transform_3, window_bounds = array<i64: 256, 128>}, {pipeline_mode = #tpu.pipeline_mode<synchronous>, transform_indices = @transform_4, window_bounds = array<i64: 1, 128>}, {transform_indices = @transform_5, window_bounds = array<i64: 16, 128>}]} {
    %c0 = arith.constant 0 : index
    %c0_0 = arith.constant 0 : index
    %0 = vector.load %arg1[%c0, %c0_0] : memref<16x512xbf16, #tpu.memory_space<vmem>>, vector<16x512xbf16>
    %c0_1 = arith.constant 0 : index
    %c0_2 = arith.constant 0 : index
    %1 = vector.load %arg2[%c0_1, %c0_2] : memref<512x256xbf16, #tpu.memory_space<vmem>>, vector<512x256xbf16>
    %cst = arith.constant dense<0.000000e+00> : vector<16x256xf32>
    %2 = tpu.matmul %0, %1, %cst {dimension_numbers = #tpu.dot_dimension_numbers<[1], [0], [0], [1], [0, 0, 1, 1], [], []>} : vector<16x512xbf16>, vector<512x256xbf16>, vector<16x256xf32> -> vector<16x256xf32>
    %c0_3 = arith.constant 0 : index
    %c0_4 = arith.constant 0 : index
    %3 = vector.load %arg3[%c0_3, %c0_4] : memref<1x256xf32, #tpu.memory_space<vmem>>, vector<1x256xf32>
    %4 = vector.broadcast %3 : vector<1x256xf32> to vector<16x256xf32>
    %5 = arith.addf %2, %4 : vector<16x256xf32>
    %cst_5 = arith.constant 0.000000e+00 : f32
    %6 = vector.broadcast %cst_5 : f32 to vector<16x256xf32>
    %7 = arith.maximumf %5, %6 : vector<16x256xf32>
    %8 = arith.truncf %7 : vector<16x256xf32> to vector<16x256xbf16>
    %c0_6 = arith.constant 0 : index
    %c0_7 = arith.constant 0 : index
    %9 = vector.load %arg4[%c0_6, %c0_7] : memref<256x128xbf16, #tpu.memory_space<vmem>>, vector<256x128xbf16>
    %cst_8 = arith.constant dense<0.000000e+00> : vector<16x128xf32>
    %10 = tpu.matmul %8, %9, %cst_8 {dimension_numbers = #tpu.dot_dimension_numbers<[1], [0], [0], [1], [0, 0, 1, 1], [], []>} : vector<16x256xbf16>, vector<256x128xbf16>, vector<16x128xf32> -> vector<16x128xf32>
    %c0_9 = arith.constant 0 : index
    %c0_10 = arith.constant 0 : index
    %11 = vector.load %arg5[%c0_9, %c0_10] : memref<1x128xf32, #tpu.memory_space<vmem>>, vector<1x128xf32>
    %12 = vector.broadcast %11 : vector<1x128xf32> to vector<16x128xf32>
    %13 = arith.addf %10, %12 : vector<16x128xf32>
    %c0_11 = arith.constant 0 : index
    %c0_12 = arith.constant 0 : index
    %14 = vector.load %arg6[%c0_11, %c0_12] : memref<16x128xf32, #tpu.memory_space<vmem>>, vector<16x128xf32>
    tpu.vector_store %arg6[%c0_11, %c0_12], %13 {strides = array<i32>} : memref<16x128xf32, #tpu.memory_space<vmem>>, vector<16x128xf32>,
    return
  }
  func.func @transform_0(%arg0: i32) -> (i32, i32) {
    %c0_i32 = arith.constant 0 : i32
    %c0_i32_0 = arith.constant 0 : i32
    return %arg0, %c0_i32 : i32, i32
  }
  func.func @transform_1(%arg0: i32) -> (i32, i32) {
    %c0_i32 = arith.constant 0 : i32
    %c0_i32_0 = arith.constant 0 : i32
    %c0_i32_1 = arith.constant 0 : i32
    return %c0_i32, %c0_i32_0 : i32, i32
  }
  func.func @transform_2(%arg0: i32) -> (i32, i32) {
    %c0_i32 = arith.constant 0 : i32
    %c0_i32_0 = arith.constant 0 : i32
    %c0_i32_1 = arith.constant 0 : i32
    return %c0_i32, %c0_i32_0 : i32, i32
  }
  func.func @transform_3(%arg0: i32) -> (i32, i32) {
    %c0_i32 = arith.constant 0 : i32
    %c0_i32_0 = arith.constant 0 : i32
    %c0_i32_1 = arith.constant 0 : i32
    return %c0_i32, %c0_i32_0 : i32, i32
  }
  func.func @transform_4(%arg0: i32) -> (i32, i32) {
    %c0_i32 = arith.constant 0 : i32
    %c0_i32_0 = arith.constant 0 : i32
    %c0_i32_1 = arith.constant 0 : i32
    return %c0_i32, %c0_i32_0 : i32, i32
  }
  func.func @transform_5(%arg0: i32) -> (i32, i32) {
    %c0_i32 = arith.constant 0 : i32
    %c0_i32_0 = arith.constant 0 : i32
    return %arg0, %c0_i32 : i32, i32
  }
}

</mosaic_0001>

<llo_original>
// kernel: classnet_forward.1
$region0: #{classnet_forward.1}
  #allocation0 [shape = 'u32[]', space=smem, size = 0x4, offset = 0x4, fixed_abs, tag = 'smem constant byte address 0x4 - core index']
  #allocation1 [shape = 'u32[144,128]{1,0:T(1,128)}', space=vmem, size = 0x12000, scoped, tag = 'internal scratch']
  %s0 = inlined_call_operand.vmem [shape: bf16[16,512], index: 0, kind: input, shape index: {}]
  %s1 = inlined_call_operand.vmem [shape: bf16[512,256], index: 1, kind: input, shape index: {}]
  %s2 = inlined_call_operand.vmem [shape: f32[1,256], index: 2, kind: input, shape index: {}]
  %s3 = inlined_call_operand.vmem [shape: bf16[256,128], index: 3, kind: input, shape index: {}]
  %s4 = inlined_call_operand.vmem [shape: f32[1,128], index: 4, kind: input, shape index: {}]
  %s5 = inlined_call_operand.vmem [shape: f32[16,128], index: 5, kind: output, shape index: {}]
  %s6 = sld [smem:[#allocation0]]
  $region30: #{classnet_forward.1} parent=0
    _
  %s8 = ssub.s32 1, %s6
  %s9 = scalar_select 0, %s8, %s6
  // Predicated region
  $region2: #{classnet_forward.1} parent=0 // pred_check
    _
  $region3: #{classnet_forward.1} parent=0 // pred_check_branch
    %11 = sbr.rel (0) target = $region5
  $region4: #{classnet_forward.1} parent=0 // pred_region
    _
  $region5: #{classnet_forward.1} parent=0 // pred_fallthru
    _
  // Predicated region
  $region6: #{classnet_forward.1} parent=0 // pred_check
    _
  $region7: #{classnet_forward.1} parent=0 // pred_check_branch
    %13 = sbr.rel (0) target = $region9
  $region8: #{classnet_forward.1} parent=0 // pred_region
    _
  $region9: #{classnet_forward.1} parent=0 // pred_fallthru
    _
  // Predicated region
  $region10: #{classnet_forward.1} parent=0 // pred_check
    _
  $region11: #{classnet_forward.1} parent=0 // pred_check_branch
    %15 = sbr.rel (0) target = $region13
  $region12: #{classnet_forward.1} parent=0 // pred_region
    _
  $region13: #{classnet_forward.1} parent=0 // pred_fallthru
    _
  // Predicated region
  $region14: #{classnet_forward.1} parent=0 // pred_check
    _
  $region15: #{classnet_forward.1} parent=0 // pred_check_branch
    %17 = sbr.rel (0) target = $region17
  $region16: #{classnet_forward.1} parent=0 // pred_region
    _
  $region17: #{classnet_forward.1} parent=0 // pred_fallthru
    _
  // Predicated region
  $region18: #{classnet_forward.1} parent=0 // pred_check
    _
  $region19: #{classnet_forward.1} parent=0 // pred_check_branch
    %19 = sbr.rel (0) target = $region21
  $region20: #{classnet_forward.1} parent=0 // pred_region
    _
  $region21: #{classnet_forward.1} parent=0 // pred_fallthru
    _
  %v21 = vld [vmem:[%s0] sm:$0xff]
  %v22 = vld [vmem:[%s0 + $0x8] sm:$0xff]
  %v23 = vld [vmem:[%s0 + $0x10] sm:$0xff]
  %v24 = vld [vmem:[%s0 + $0x18] sm:$0xff]
  %v25 = vld [vmem:[%s1] sm:$0xff]
  %v26 = vld [vmem:[%s1 + $0x8] sm:$0xff]
  %v27 = vld [vmem:[%s1 + $0x10] sm:$0xff]
  %v28 = vld [vmem:[%s1 + $0x18] sm:$0xff]
  %v29 = vld [vmem:[%s1 + $0x20] sm:$0xff]
  %v30 = vld [vmem:[%s1 + $0x28] sm:$0xff]
  %v31 = vld [vmem:[%s1 + $0x30] sm:$0xff]
  %v32 = vld [vmem:[%s1 + $0x38] sm:$0xff]
  %v33 = vld [vmem:[%s1 + $0x40] sm:$0xff]
  %v34 = vld [vmem:[%s1 + $0x48] sm:$0xff]
  %v35 = vld [vmem:[%s1 + $0x50] sm:$0xff]
  %v36 = vld [vmem:[%s1 + $0x58] sm:$0xff]
  %v37 = vld [vmem:[%s1 + $0x60] sm:$0xff]
  %v38 = vld [vmem:[%s1 + $0x68] sm:$0xff]
  %v39 = vld [vmem:[%s1 + $0x70] sm:$0xff]
  %v40 = vld [vmem:[%s1 + $0x78] sm:$0xff]
  %v41 = vld [vmem:[%s1 + $0x80] sm:$0xff]
  %v42 = vld [vmem:[%s1 + $0x88] sm:$0xff]
  %v43 = vld [vmem:[%s1 + $0x90] sm:$0xff]
  %v44 = vld [vmem:[%s1 + $0x98] sm:$0xff]
  %v45 = vld [vmem:[%s1 + $0xa0] sm:$0xff]
  %v46 = vld [vmem:[%s1 + $0xa8] sm:$0xff]
  %v47 = vld [vmem:[%s1 + $0xb0] sm:$0xff]
  %v48 = vld [vmem:[%s1 + $0xb8] sm:$0xff]
  %v49 = vld [vmem:[%s1 + $0xc0] sm:$0xff]
  %v50 = vld [vmem:[%s1 + $0xc8] sm:$0xff]
  %v51 = vld [vmem:[%s1 + $0xd0] sm:$0xff]
  %v52 = vld [vmem:[%s1 + $0xd8] sm:$0xff]
  %v53 = vld [vmem:[%s1 + $0xe0] sm:$0xff]
  %v54 = vld [vmem:[%s1 + $0xe8] sm:$0xff]
  %v55 = vld [vmem:[%s1 + $0xf0] sm:$0xff]
  %v56 = vld [vmem:[%s1 + $0xf8] sm:$0xff]
  %v57 = vld [vmem:[%s1 + $0x100] sm:$0xff]
  %v58 = vld [vmem:[%s1 + $0x108] sm:$0xff]
  %v59 = vld [vmem:[%s1 + $0x110] sm:$0xff]
  %v60 = vld [vmem:[%s1 + $0x118] sm:$0xff]
  %v61 = vld [vmem:[%s1 + $0x120] sm:$0xff]
  %v62 = vld [vmem:[%s1 + $0x128] sm:$0xff]
  %v63 = vld [vmem:[%s1 + $0x130] sm:$0xff]
  %v64 = vld [vmem:[%s1 + $0x138] sm:$0xff]
  %v65 = vld [vmem:[%s1 + $0x140] sm:$0xff]
  %v66 = vld [vmem:[%s1 + $0x148] sm:$0xff]
  %v67 = vld [vmem:[%s1 + $0x150] sm:$0xff]
  %v68 = vld [vmem:[%s1 + $0x158] sm:$0xff]
  %v69 = vld [vmem:[%s1 + $0x160] sm:$0xff]
  %v70 = vld [vmem:[%s1 + $0x168] sm:$0xff]
  %v71 = vld [vmem:[%s1 + $0x170] sm:$0xff]
  %v72 = vld [vmem:[%s1 + $0x178] sm:$0xff]
  %v73 = vld [vmem:[%s1 + $0x180] sm:$0xff]
  %v74 = vld [vmem:[%s1 + $0x188] sm:$0xff]
  %v75 = vld [vmem:[%s1 + $0x190] sm:$0xff]
  %v76 = vld [vmem:[%s1 + $0x198] sm:$0xff]
  %v77 = vld [vmem:[%s1 + $0x1a0] sm:$0xff]
  %v78 = vld [vmem:[%s1 + $0x1a8] sm:$0xff]
  %v79 = vld [vmem:[%s1 + $0x1b0] sm:$0xff]
  %v80 = vld [vmem:[%s1 + $0x1b8] sm:$0xff]
  %v81 = vld [vmem:[%s1 + $0x1c0] sm:$0xff]
  %v82 = vld [vmem:[%s1 + $0x1c8] sm:$0xff]
  %v83 = vld [vmem:[%s1 + $0x1d0] sm:$0xff]
  %v84 = vld [vmem:[%s1 + $0x1d8] sm:$0xff]
  %v85 = vld [vmem:[%s1 + $0x1e0] sm:$0xff]
  %v86 = vld [vmem:[%s1 + $0x1e8] sm:$0xff]
  %v87 = vld [vmem:[%s1 + $0x1f0] sm:$0xff]
  %v88 = vld [vmem:[%s1 + $0x1f8] sm:$0xff]
  %v89 = vld [vmem:[%s2] sm:$0x3]
  %v91 = vlaneseq
  %v92 = vshrl.u32 %v91, 7
  %v93 = vsub.s32 0, %v92
  %v94 = vrot.slane %v89, %v93
  %v95 = vlaneseq
  %v96 = vshrl.u32 %v95, 7
  %v97 = vsub.s32 1, %v96
  %v98 = vrot.slane %v89, %v97
  %v105 = vunpack.c.l.b16 %v21
  %v106 = vunpack.c.h.b16 %v21
  %v107 = vunpack.c.l.b16 %v22
  %v108 = vunpack.c.h.b16 %v22
  %v109 = vunpack.c.l.b16 %v23
  %v110 = vunpack.c.h.b16 %v23
  %v111 = vunpack.c.l.b16 %v24
  %v112 = vunpack.c.h.b16 %v24
  %v113 = vpack.c.b16 %v109, %v105
  %v114 = vpack.c.b16 %v110, %v106
  %v115 = vpack.c.b16 %v111, %v107
  %v116 = vpack.c.b16 %v112, %v108
  %v185 = vunpack.c.l.b16 %v25
  %v186 = vunpack.c.h.b16 %v25
  %v187 = vunpack.c.l.b16 %v26
  %v188 = vunpack.c.h.b16 %v26
  %v189 = vunpack.c.l.b16 %v27
  %v190 = vunpack.c.h.b16 %v27
  %v191 = vunpack.c.l.b16 %v28
  %v192 = vunpack.c.h.b16 %v28
  %v193 = vunpack.c.l.b16 %v29
  %v194 = vunpack.c.h.b16 %v29
  %v195 = vunpack.c.l.b16 %v30
  %v196 = vunpack.c.h.b16 %v30
  %v197 = vunpack.c.l.b16 %v31
  %v198 = vunpack.c.h.b16 %v31
  %v199 = vunpack.c.l.b16 %v32
  %v200 = vunpack.c.h.b16 %v32
  %v201 = vunpack.c.l.b16 %v33
  %v202 = vunpack.c.h.b16 %v33
  %v203 = vunpack.c.l.b16 %v34
  %v204 = vunpack.c.h.b16 %v34
  %v205 = vunpack.c.l.b16 %v35
  %v206 = vunpack.c.h.b16 %v35
  %v207 = vunpack.c.l.b16 %v36
  %v208 = vunpack.c.h.b16 %v36
  %v209 = vunpack.c.l.b16 %v37
  %v210 = vunpack.c.h.b16 %v37
  %v211 = vunpack.c.l.b16 %v38
  %v212 = vunpack.c.h.b16 %v38
  %v213 = vunpack.c.l.b16 %v39
  %v214 = vunpack.c.h.b16 %v39
  %v215 = vunpack.c.l.b16 %v40
  %v216 = vunpack.c.h.b16 %v40
  %v217 = vunpack.c.l.b16 %v41
  %v218 = vunpack.c.h.b16 %v41
  %v219 = vunpack.c.l.b16 %v42
  %v220 = vunpack.c.h.b16 %v42
  %v221 = vunpack.c.l.b16 %v43
  %v222 = vunpack.c.h.b16 %v43
  %v223 = vunpack.c.l.b16 %v44
  %v224 = vunpack.c.h.b16 %v44
  %v225 = vunpack.c.l.b16 %v45
  %v226 = vunpack.c.h.b16 %v45
  %v227 = vunpack.c.l.b16 %v46
  %v228 = vunpack.c.h.b16 %v46
  %v229 = vunpack.c.l.b16 %v47
  %v230 = vunpack.c.h.b16 %v47
  %v231 = vunpack.c.l.b16 %v48
  %v232 = vunpack.c.h.b16 %v48
  %v233 = vunpack.c.l.b16 %v49
  %v234 = vunpack.c.h.b16 %v49
  %v235 = vunpack.c.l.b16 %v50
  %v236 = vunpack.c.h.b16 %v50
  %v237 = vunpack.c.l.b16 %v51
  %v238 = vunpack.c.h.b16 %v51
  %v239 = vunpack.c.l.b16 %v52
  %v240 = vunpack.c.h.b16 %v52
  %v241 = vunpack.c.l.b16 %v53
  %v242 = vunpack.c.h.b16 %v53
  %v243 = vunpack.c.l.b16 %v54
  %v244 = vunpack.c.h.b16 %v54
  %v245 = vunpack.c.l.b16 %v55
  %v246 = vunpack.c.h.b16 %v55
  %v247 = vunpack.c.l.b16 %v56
  %v248 = vunpack.c.h.b16 %v56
  %v249 = vunpack.c.l.b16 %v57
  %v250 = vunpack.c.h.b16 %v57
  %v251 = vunpack.c.l.b16 %v58
  %v252 = vunpack.c.h.b16 %v58
  %v253 = vunpack.c.l.b16 %v59
  %v254 = vunpack.c.h.b16 %v59
  %v255 = vunpack.c.l.b16 %v60
  %v256 = vunpack.c.h.b16 %v60
  %v257 = vunpack.c.l.b16 %v61
  %v258 = vunpack.c.h.b16 %v61
  %v259 = vunpack.c.l.b16 %v62
  %v260 = vunpack.c.h.b16 %v62
  %v261 = vunpack.c.l.b16 %v63
  %v262 = vunpack.c.h.b16 %v63
  %v263 = vunpack.c.l.b16 %v64
  %v264 = vunpack.c.h.b16 %v64
  %v265 = vunpack.c.l.b16 %v65
  %v266 = vunpack.c.h.b16 %v65
  %v267 = vunpack.c.l.b16 %v66
  %v268 = vunpack.c.h.b16 %v66
  %v269 = vunpack.c.l.b16 %v67
  %v270 = vunpack.c.h.b16 %v67
  %v271 = vunpack.c.l.b16 %v68
  %v272 = vunpack.c.h.b16 %v68
  %v273 = vunpack.c.l.b16 %v69
  %v274 = vunpack.c.h.b16 %v69
  %v275 = vunpack.c.l.b16 %v70
  %v276 = vunpack.c.h.b16 %v70
  %v277 = vunpack.c.l.b16 %v71
  %v278 = vunpack.c.h.b16 %v71
  %v279 = vunpack.c.l.b16 %v72
  %v280 = vunpack.c.h.b16 %v72
  %v281 = vunpack.c.l.b16 %v73
  %v282 = vunpack.c.h.b16 %v73
  %v283 = vunpack.c.l.b16 %v74
  %v284 = vunpack.c.h.b16 %v74
  %v285 = vunpack.c.l.b16 %v75
  %v286 = vunpack.c.h.b16 %v75
  %v287 = vunpack.c.l.b16 %v76
  %v288 = vunpack.c.h.b16 %v76
  %v289 = vunpack.c.l.b16 %v77
  %v290 = vunpack.c.h.b16 %v77
  %v291 = vunpack.c.l.b16 %v78
  %v292 = vunpack.c.h.b16 %v78
  %v293 = vunpack.c.l.b16 %v79
  %v294 = vunpack.c.h.b16 %v79
  %v295 = vunpack.c.l.b16 %v80
  %v296 = vunpack.c.h.b16 %v80
  %v297 = vunpack.c.l.b16 %v81
  %v298 = vunpack.c.h.b16 %v81
  %v299 = vunpack.c.l.b16 %v82
  %v300 = vunpack.c.h.b16 %v82
  %v301 = vunpack.c.l.b16 %v83
  %v302 = vunpack.c.h.b16 %v83
  %v303 = vunpack.c.l.b16 %v84
  %v304 = vunpack.c.h.b16 %v84
  %v305 = vunpack.c.l.b16 %v85
  %v306 = vunpack.c.h.b16 %v85
  %v307 = vunpack.c.l.b16 %v86
  %v308 = vunpack.c.h.b16 %v86
  %v309 = vunpack.c.l.b16 %v87
  %v310 = vunpack.c.h.b16 %v87
  %v311 = vunpack.c.l.b16 %v88
  %v312 = vunpack.c.h.b16 %v88
  %v313 = vpack.c.b16 %v187, %v185
  %v314 = vpack.c.b16 %v188, %v186
  %v315 = vpack.c.b16 %v191, %v189
  %v316 = vpack.c.b16 %v192, %v190
  %v317 = vpack.c.b16 %v195, %v193
  %v318 = vpack.c.b16 %v196, %v194
  %v319 = vpack.c.b16 %v199, %v197
  %v320 = vpack.c.b16 %v200, %v198
  %v321 = vpack.c.b16 %v203, %v201
  %v322 = vpack.c.b16 %v204, %v202
  %v323 = vpack.c.b16 %v207, %v205
  %v324 = vpack.c.b16 %v208, %v206
  %v325 = vpack.c.b16 %v211, %v209
  %v326 = vpack.c.b16 %v212, %v210
  %v327 = vpack.c.b16 %v215, %v213
  %v328 = vpack.c.b16 %v216, %v214
  %v329 = vpack.c.b16 %v219, %v217
  %v330 = vpack.c.b16 %v220, %v218
  %v331 = vpack.c.b16 %v223, %v221
  %v332 = vpack.c.b16 %v224, %v222
  %v333 = vpack.c.b16 %v227, %v225
  %v334 = vpack.c.b16 %v228, %v226
  %v335 = vpack.c.b16 %v231, %v229
  %v336 = vpack.c.b16 %v232, %v230
  %v337 = vpack.c.b16 %v235, %v233
  %v338 = vpack.c.b16 %v236, %v234
  %v339 = vpack.c.b16 %v239, %v237
  %v340 = vpack.c.b16 %v240, %v238
  %v341 = vpack.c.b16 %v243, %v241
  %v342 = vpack.c.b16 %v244, %v242
  %v343 = vpack.c.b16 %v247, %v245
  %v344 = vpack.c.b16 %v248, %v246
  %v345 = vpack.c.b16 %v251, %v249
  %v346 = vpack.c.b16 %v252, %v250
  %v347 = vpack.c.b16 %v255, %v253
  %v348 = vpack.c.b16 %v256, %v254
  %v349 = vpack.c.b16 %v259, %v257
  %v350 = vpack.c.b16 %v260, %v258
  %v351 = vpack.c.b16 %v263, %v261
  %v352 = vpack.c.b16 %v264, %v262
  %v353 = vpack.c.b16 %v267, %v265
  %v354 = vpack.c.b16 %v268, %v266
  %v355 = vpack.c.b16 %v271, %v269
  %v356 = vpack.c.b16 %v272, %v270
  %v357 = vpack.c.b16 %v275, %v273
  %v358 = vpack.c.b16 %v276, %v274
  %v359 = vpack.c.b16 %v279, %v277
  %v360 = vpack.c.b16 %v280, %v278
  %v361 = vpack.c.b16 %v283, %v281
  %v362 = vpack.c.b16 %v284, %v282
  %v363 = vpack.c.b16 %v287, %v285
  %v364 = vpack.c.b16 %v288, %v286
  %v365 = vpack.c.b16 %v291, %v289
  %v366 = vpack.c.b16 %v292, %v290
  %v367 = vpack.c.b16 %v295, %v293
  %v368 = vpack.c.b16 %v296, %v294
  %v369 = vpack.c.b16 %v299, %v297
  %v370 = vpack.c.b16 %v300, %v298
  %v371 = vpack.c.b16 %v303, %v301
  %v372 = vpack.c.b16 %v304, %v302
  %v373 = vpack.c.b16 %v307, %v305
  %v374 = vpack.c.b16 %v308, %v306
  %v375 = vpack.c.b16 %v311, %v309
  %v376 = vpack.c.b16 %v312, %v310
  %441 = vmatprep.subr.bf16.mxu0 %v328
  %442 = vmatpush1.bf16.msra.mxu0 %v327
  %443 = vmatprep.subr.bf16.mxu0 %v326
  %444 = vmatpush1.bf16.msra.mxu0 %v325
  %445 = vmatprep.subr.bf16.mxu0 %v324
  %446 = vmatpush1.bf16.msra.mxu0 %v323
  %447 = vmatprep.subr.bf16.mxu0 %v322
  %448 = vmatpush1.bf16.msra.mxu0 %v321
  %449 = vmatprep.subr.bf16.mxu0 %v320
  %450 = vmatpush1.bf16.msra.mxu0 %v319
  %451 = vmatprep.subr.bf16.mxu0 %v318
  %452 = vmatpush1.bf16.msra.mxu0 %v317
  %453 = vmatprep.subr.bf16.mxu0 %v316
  %454 = vmatpush1.bf16.msra.mxu0 %v315
  %455 = vmatprep.subr.bf16.mxu0 %v314
  %456 = vmatpush1.bf16.msra.mxu0 %v313
  %457 = vmatprep.subr.bf16.mxu0 %v344
  %458 = vmatpush2.bf16.msra.mxu0 %v343
  %459 = vmatprep.subr.bf16.mxu0 %v342
  %460 = vmatpush2.bf16.msra.mxu0 %v341
  %461 = vmatprep.subr.bf16.mxu0 %v340
  %462 = vmatpush2.bf16.msra.mxu0 %v339
  %463 = vmatprep.subr.bf16.mxu0 %v338
  %464 = vmatpush2.bf16.msra.mxu0 %v337
  %465 = vmatprep.subr.bf16.mxu0 %v336
  %466 = vmatpush2.bf16.msra.mxu0 %v335
  %467 = vmatprep.subr.bf16.mxu0 %v334
  %468 = vmatpush2.bf16.msra.mxu0 %v333
  %469 = vmatprep.subr.bf16.mxu0 %v332
  %470 = vmatpush2.bf16.msra.mxu0 %v331
  %471 = vmatprep.subr.bf16.mxu0 %v330
  %472 = vmatpush2.bf16.msra.mxu0 %v329
  %473 = vmatprep.mubr.bf16.mxu0 %v114
  %474 = vmatmul.mubr.bf16.gmra.mxu0 %v113
  %v475 = vpop.f32.mrf.mxu0
  %v476 = vadd.f32 %v94, %v475
  %v477 = vpop.f32.mrf.mxu0
  %v478 = vadd.f32 %v98, %v477
  %v479 = vpop.f32.mrf.mxu0
  %v480 = vadd.f32 %v94, %v479
  %v481 = vpop.f32.mrf.mxu0
  %v482 = vadd.f32 %v98, %v481
  %483 = vdwg.mxu0
  %484 = vmatprep.subr.bf16.mxu0 %v360
  %485 = vmatpush1.bf16.msra.mxu0 %v359
  %486 = vmatprep.subr.bf16.mxu0 %v358
  %487 = vmatpush1.bf16.msra.mxu0 %v357
  %488 = vmatprep.subr.bf16.mxu0 %v356
  %489 = vmatpush1.bf16.msra.mxu0 %v355
  %490 = vmatprep.subr.bf16.mxu0 %v354
  %491 = vmatpush1.bf16.msra.mxu0 %v353
  %492 = vmatprep.subr.bf16.mxu0 %v352
  %493 = vmatpush1.bf16.msra.mxu0 %v351
  %494 = vmatprep.subr.bf16.mxu0 %v350
  %495 = vmatpush1.bf16.msra.mxu0 %v349
  %496 = vmatprep.subr.bf16.mxu0 %v348
  %497 = vmatpush1.bf16.msra.mxu0 %v347
  %498 = vmatprep.subr.bf16.mxu0 %v346
  %499 = vmatpush1.bf16.msra.mxu0 %v345
  %500 = vmatprep.subr.bf16.mxu0 %v376
  %501 = vmatpush2.bf16.msra.mxu0 %v375
  %502 = vmatprep.subr.bf16.mxu0 %v374
  %503 = vmatpush2.bf16.msra.mxu0 %v373
  %504 = vmatprep.subr.bf16.mxu0 %v372
  %505 = vmatpush2.bf16.msra.mxu0 %v371
  %506 = vmatprep.subr.bf16.mxu0 %v370
  %507 = vmatpush2.bf16.msra.mxu0 %v369
  %508 = vmatprep.subr.bf16.mxu0 %v368
  %509 = vmatpush2.bf16.msra.mxu0 %v367
  %510 = vmatprep.subr.bf16.mxu0 %v366
  %511 = vmatpush2.bf16.msra.mxu0 %v365
  %512 = vmatprep.subr.bf16.mxu0 %v364
  %513 = vmatpush2.bf16.msra.mxu0 %v363
  %514 = vmatprep.subr.bf16.mxu0 %v362
  %515 = vmatpush2.bf16.msra.mxu0 %v361
  %516 = vmatprep.mubr.bf16.mxu0 %v116
  %517 = vmatmul.mubr.bf16.gmra.mxu0 %v115
  %v518 = vpop.f32.mrf.mxu0
  %v519 = vadd.f32 %v476, %v518
  %v520 = vpop.f32.mrf.mxu0
  %v521 = vadd.f32 %v478, %v520
  %v522 = vpop.f32.mrf.mxu0
  %v523 = vadd.f32 %v480, %v522
  %v524 = vpop.f32.mrf.mxu0
  %v525 = vadd.f32 %v482, %v524
  %526 = vdwg.mxu0
  %v527 = vmax.f32 %v519, 0.0
  %v528 = vmax.f32 %v521, 0.0
  %v529 = vmax.f32 %v523, 0.0
  %v530 = vmax.f32 %v525, 0.0
  %v531 = vpack.c.bf16 %v529, %v527
  %v532 = vpack.c.bf16 %v530, %v528
  %v533 = vld [vmem:[%s3] sm:$0xf]
  %v534 = vld [vmem:[%s3 + $0x4] sm:$0xf]
  %v535 = vld [vmem:[%s3 + $0x8] sm:$0xf]
  %v536 = vld [vmem:[%s3 + $0xc] sm:$0xf]
  %v537 = vld [vmem:[%s3 + $0x10] sm:$0xf]
  %v538 = vld [vmem:[%s3 + $0x14] sm:$0xf]
  %v539 = vld [vmem:[%s3 + $0x18] sm:$0xf]
  %v540 = vld [vmem:[%s3 + $0x1c] sm:$0xf]
  %v541 = vld [vmem:[%s3 + $0x20] sm:$0xf]
  %v542 = vld [vmem:[%s3 + $0x24] sm:$0xf]
  %v543 = vld [vmem:[%s3 + $0x28] sm:$0xf]
  %v544 = vld [vmem:[%s3 + $0x2c] sm:$0xf]
  %v545 = vld [vmem:[%s3 + $0x30] sm:$0xf]
  %v546 = vld [vmem:[%s3 + $0x34] sm:$0xf]
  %v547 = vld [vmem:[%s3 + $0x38] sm:$0xf]
  %v548 = vld [vmem:[%s3 + $0x3c] sm:$0xf]
  %v549 = vld [vmem:[%s3 + $0x40] sm:$0xf]
  %v550 = vld [vmem:[%s3 + $0x44] sm:$0xf]
  %v551 = vld [vmem:[%s3 + $0x48] sm:$0xf]
  %v552 = vld [vmem:[%s3 + $0x4c] sm:$0xf]
  %v553 = vld [vmem:[%s3 + $0x50] sm:$0xf]
  %v554 = vld [vmem:[%s3 + $0x54] sm:$0xf]
  %v555 = vld [vmem:[%s3 + $0x58] sm:$0xf]
  %v556 = vld [vmem:[%s3 + $0x5c] sm:$0xf]
  %v557 = vld [vmem:[%s3 + $0x60] sm:$0xf]
  %v558 = vld [vmem:[%s3 + $0x64] sm:$0xf]
  %v559 = vld [vmem:[%s3 + $0x68] sm:$0xf]
  %v560 = vld [vmem:[%s3 + $0x6c] sm:$0xf]
  %v561 = vld [vmem:[%s3 + $0x70] sm:$0xf]
  %v562 = vld [vmem:[%s3 + $0x74] sm:$0xf]
  %v563 = vld [vmem:[%s3 + $0x78] sm:$0xf]
  %v564 = vld [vmem:[%s3 + $0x7c] sm:$0xf]
  %v565 = vld [vmem:[%s4] sm:$0x1]
  %v567 = vlaneseq
  %v568 = vshrl.u32 %v567, 7
  %v569 = vsub.s32 0, %v568
  %v570 = vrot.slane %v565, %v569
  %v604 = vunpack.c.l.b16 %v533
  %v605 = vunpack.c.l.b16 %v534
  %v606 = vunpack.c.l.b16 %v535
  %v607 = vunpack.c.l.b16 %v536
  %v608 = vunpack.c.l.b16 %v537
  %v609 = vunpack.c.l.b16 %v538
  %v610 = vunpack.c.l.b16 %v539
  %v611 = vunpack.c.l.b16 %v540
  %v612 = vunpack.c.l.b16 %v541
  %v613 = vunpack.c.l.b16 %v542
  %v614 = vunpack.c.l.b16 %v543
  %v615 = vunpack.c.l.b16 %v544
  %v616 = vunpack.c.l.b16 %v545
  %v617 = vunpack.c.l.b16 %v546
  %v618 = vunpack.c.l.b16 %v547
  %v619 = vunpack.c.l.b16 %v548
  %v620 = vunpack.c.l.b16 %v549
  %v621 = vunpack.c.l.b16 %v550
  %v622 = vunpack.c.l.b16 %v551
  %v623 = vunpack.c.l.b16 %v552
  %v624 = vunpack.c.l.b16 %v553
  %v625 = vunpack.c.l.b16 %v554
  %v626 = vunpack.c.l.b16 %v555
  %v627 = vunpack.c.l.b16 %v556
  %v628 = vunpack.c.l.b16 %v557
  %v629 = vunpack.c.l.b16 %v558
  %v630 = vunpack.c.l.b16 %v559
  %v631 = vunpack.c.l.b16 %v560
  %v632 = vunpack.c.l.b16 %v561
  %v633 = vunpack.c.l.b16 %v562
  %v634 = vunpack.c.l.b16 %v563
  %v635 = vunpack.c.l.b16 %v564
  %v636 = vpack.c.b16 %v605, %v604
  %v637 = vpack.c.b16 %v607, %v606
  %v638 = vpack.c.b16 %v609, %v608
  %v639 = vpack.c.b16 %v611, %v610
  %v640 = vpack.c.b16 %v613, %v612
  %v641 = vpack.c.b16 %v615, %v614
  %v642 = vpack.c.b16 %v617, %v616
  %v643 = vpack.c.b16 %v619, %v618
  %v644 = vpack.c.b16 %v621, %v620
  %v645 = vpack.c.b16 %v623, %v622
  %v646 = vpack.c.b16 %v625, %v624
  %v647 = vpack.c.b16 %v627, %v626
  %v648 = vpack.c.b16 %v629, %v628
  %v649 = vpack.c.b16 %v631, %v630
  %v650 = vpack.c.b16 %v633, %v632
  %v651 = vpack.c.b16 %v635, %v634
  %668 = vmatprep.subr.bf16.mxu0 0
  %669 = vmatpush1.bf16.msra.mxu0 %v643
  %670 = vmatprep.subr.bf16.mxu0 0
  %671 = vmatpush1.bf16.msra.mxu0 %v642
  %672 = vmatprep.subr.bf16.mxu0 0
  %673 = vmatpush1.bf16.msra.mxu0 %v641
  %674 = vmatprep.subr.bf16.mxu0 0
  %675 = vmatpush1.bf16.msra.mxu0 %v640
  %676 = vmatprep.subr.bf16.mxu0 0
  %677 = vmatpush1.bf16.msra.mxu0 %v639
  %678 = vmatprep.subr.bf16.mxu0 0
  %679 = vmatpush1.bf16.msra.mxu0 %v638
  %680 = vmatprep.subr.bf16.mxu0 0
  %681 = vmatpush1.bf16.msra.mxu0 %v637
  %682 = vmatprep.subr.bf16.mxu0 0
  %683 = vmatpush1.bf16.msra.mxu0 %v636
  %684 = vmatprep.subr.bf16.mxu0 0
  %685 = vmatpush2.bf16.msra.mxu0 %v651
  %686 = vmatprep.subr.bf16.mxu0 0
  %687 = vmatpush2.bf16.msra.mxu0 %v650
  %688 = vmatprep.subr.bf16.mxu0 0
  %689 = vmatpush2.bf16.msra.mxu0 %v649
  %690 = vmatprep.subr.bf16.mxu0 0
  %691 = vmatpush2.bf16.msra.mxu0 %v648
  %692 = vmatprep.subr.bf16.mxu0 0
  %693 = vmatpush2.bf16.msra.mxu0 %v647
  %694 = vmatprep.subr.bf16.mxu0 0
  %695 = vmatpush2.bf16.msra.mxu0 %v646
  %696 = vmatprep.subr.bf16.mxu0 0
  %697 = vmatpush2.bf16.msra.mxu0 %v645
  %698 = vmatprep.subr.bf16.mxu0 0
  %699 = vmatpush2.bf16.msra.mxu0 %v644
  %700 = vmatprep.mubr.bf16.mxu0 %v532
  %701 = vmatmul.mubr.bf16.gmra.mxu0 %v531
  %v702 = vpop.f32.mrf.mxu0
  %v703 = vadd.f32 %v570, %v702
  %v704 = vpop.f32.mrf.mxu0
  %v705 = vpop.f32.mrf.mxu0
  %v706 = vadd.f32 %v570, %v705
  %v707 = vpop.f32.mrf.mxu0
  %708 = vdwg.mxu0
  %709 = vst [vmem:[%s5] sm:$0xff] %v703
  %710 = vst [vmem:[%s5 + $0x8] sm:$0xff] %v706
  // Predicated region
  $region22: #{classnet_forward.1} parent=0 // pred_check
    _
  $region23: #{classnet_forward.1} parent=0 // pred_check_branch
    %712 = sbr.rel (0) target = $region25
  $region24: #{classnet_forward.1} parent=0 // pred_region
    _
  $region25: #{classnet_forward.1} parent=0 // pred_fallthru
    _
  // Predicated region
  $region26: #{classnet_forward.1} parent=0 // pred_check
    _
  $region27: #{classnet_forward.1} parent=0 // pred_check_branch
    %714 = sbr.rel (0) target = $region29
  $region28: #{classnet_forward.1} parent=0 // pred_region
    _
  $region29: #{classnet_forward.1} parent=0 // pred_fallthru
    _

</llo_original>
